<compile_context>
chip_gen: v5e
topology: v5e:2x2
jax: 0.10.0
libtpu: 0.0.40
codegen_flags: <defaults>
</compile_context>

<pallas_src>
import functools

import jax
import jax.numpy as jnp
from jax.experimental import pallas as pl
from jax.experimental.pallas import tpu as pltpu


def _ls_ce_kernel(x_ref, tgt_ref, out_ref, *, epsilon, n_total, n_cls):
    """One batch tile -> one (8,128) output block holding this tile's partial sum."""
    pid = pl.program_id(0)

    x = x_ref[...]                          # (T, C) logits, native dtype
    tgt = tgt_ref[...]                      # (T, 1) int32 class indices
    t, c = x.shape

    # Rows past the true batch size (padded last tile) are masked out below.
    # NOTE: garbage padding rows may produce NaN/Inf, but every reduction up
    # to `contrib` is strictly per-row, and invalid rows are discarded via a
    # select (jnp.where), so NaNs cannot leak into valid rows. Do not replace
    # the select with a multiply-by-mask.
    row_ids = pid * t + jax.lax.broadcasted_iota(jnp.int32, (t, 1), 0)
    valid = row_ids < n_total                                        # (T, 1)

    # Row max and one-hot gather in the native dtype (both are exact ops).
    m = jnp.max(x, axis=-1, keepdims=True)                           # (T, 1)
    col_ids = jax.lax.broadcasted_iota(jnp.int32, (1, c), 1)         # (1, C)
    tgt_x = jnp.sum(jnp.where(col_ids == tgt, x, jnp.zeros((), x.dtype)),
                    axis=-1, keepdims=True).astype(jnp.float32)      # (T, 1)

    # f32 only for exp / sums (numerically-stable logsumexp).
    xf = x.astype(jnp.float32)
    mf = m.astype(jnp.float32)
    sum_exp = jnp.sum(jnp.exp(xf - mf), axis=-1, keepdims=True)      # (T, 1)
    lse = jnp.log(sum_exp) + mf                                      # (T, 1)
    sum_x = jnp.sum(xf, axis=-1, keepdims=True)                      # (T, 1)

    # Folded label-smoothing row loss:
    #   eps/C * (C*lse - sum_x) + (1-eps) * (lse - x[i, tgt])
    # = lse - (eps/C)*sum_x - (1-eps)*x[i, tgt]
    contrib = lse - (epsilon / n_cls) * sum_x - (1.0 - epsilon) * tgt_x
    contrib = jnp.where(valid, contrib, 0.0)

    partial = jnp.sum(contrib, axis=0, keepdims=True)                # (1, 1)
    out_ref[...] = jnp.broadcast_to(partial, (8, 128)).astype(jnp.float32)


def _physical_vmem_bytes():
    try:
        v = int(pltpu.get_tpu_info().vmem_capacity_bytes)
        if v > 0:
            return v
    except Exception:
        pass
    return 64 * (1 << 20)   # conservative (v7x per-TC size); legal everywhere


def _row_align(itemsize):
    # Native sublane packing: 8 rows for 32-bit, 16 for bf16, 32 for int8.
    return max(8, 32 // max(1, itemsize))


def _per_row_vmem(c, itemsize):
    # 2 pipelined native-dtype logit buffers + ~3x f32 temporaries
    # (f32 cast / exp / one-hot select) + 2 lane-padded (row,1) int32 target
    # buffers (last dim 1 pads to 128 lanes in VMEM).
    return 2 * c * itemsize + 3 * c * 4 + 2 * 128 * 4


def _choose_tile_n(n, c, itemsize, phys_vmem):
    """Row tile sized for a large streaming block, clamped to fit VMEM."""
    budget = 8 * (1 << 20) if phys_vmem >= (100 << 20) else 5 * (1 << 20)
    align = _row_align(itemsize)
    rows = budget // max(1, c * itemsize)
    rows = max(align, min(8192, rows))
    # Keep the full per-step working set well under the physical VMEM.
    fit = max(align, (phys_vmem // 2) // _per_row_vmem(c, itemsize))
    rows = min(rows, fit)
    rows = max(align, (rows // align) * align)
    if rows >= n:
        return n          # single block covering the whole batch is always legal
    return rows


def _vmem_limit_bytes(tile_n, c, itemsize, phys_vmem):
    need = tile_n * _per_row_vmem(c, itemsize) + 2 * 8 * 128 * 4 + (2 << 20)
    hi = max(phys_vmem - (8 << 20), 16 << 20)     # stay below physical VMEM
    return int(min(max(need, 32 << 20), hi))


def label_smoothing_cross_entropy(output, target, epsilon=0.1,
                                  reduction='mean', tile_n=None):
    """output: (N, C) float logits (any float dtype); target: (N,) int indices."""
    n, c = output.shape
    itemsize = output.dtype.itemsize
    tgt2d = target.astype(jnp.int32).reshape(n, 1)

    phys_vmem = _physical_vmem_bytes()
    if tile_n is None:
        tile_n = _choose_tile_n(n, c, itemsize, phys_vmem)
    tile_n = int(min(tile_n, n))
    align = _row_align(itemsize)
    if tile_n < n and tile_n % align != 0:
        tile_n = max(align, (tile_n // align) * align)

    num_blocks = pl.cdiv(n, tile_n)
    grid = (num_blocks,)

    cost = pl.CostEstimate(
        flops=6 * n * c,
        transcendentals=n * c + n,
        bytes_accessed=n * c * itemsize + n * 4 + num_blocks * 8 * 128 * 4,
    )

    partials = pl.pallas_call(
        functools.partial(_ls_ce_kernel, epsilon=float(epsilon),
                          n_total=n, n_cls=c),
        out_shape=jax.ShapeDtypeStruct((num_blocks * 8, 128), jnp.float32),
        grid=grid,
        in_specs=[
            pl.BlockSpec((tile_n, c), lambda i: (i, 0)),
            pl.BlockSpec((tile_n, 1), lambda i: (i, 0)),
        ],
        out_specs=pl.BlockSpec((8, 128), lambda i: (i, 0)),
        compiler_params=pltpu.CompilerParams(
            dimension_semantics=("parallel",),   # no cross-step dependency
            vmem_limit_bytes=_vmem_limit_bytes(tile_n, c, itemsize, phys_vmem),
        ),
        cost_estimate=cost,
    )(output, tgt2d)

    # One scalar per grid step (broadcast over its own (8,128) block).
    total = jnp.sum(partials.reshape(num_blocks, 8, 128)[:, 0, 0])

    if reduction == 'mean':
        return total / n
    elif reduction == 'sum':
        return total
    # TODO(synk): reduction='none' needs a per-row output; not wired up.
    raise NotImplementedError("reduction='none' is not supported by this kernel")


def _reference(output, target, epsilon=0.1, reduction='mean'):
    # Pure-JAX reference mirroring the PyTorch module.
    n_cls = output.shape[-1]
    log_preds = jax.nn.log_softmax(output.astype(jnp.float32), axis=-1)
    log_loss = -jnp.sum(log_preds, axis=-1)
    nll = -jnp.take_along_axis(log_preds, target[:, None], axis=-1)[:, 0]
    if reduction == 'mean':
        log_loss, nll = jnp.mean(log_loss), jnp.mean(nll)
    elif reduction == 'sum':
        log_loss, nll = jnp.sum(log_loss), jnp.sum(nll)
    return epsilon * (log_loss / n_cls) + (1.0 - epsilon) * nll


if __name__ == "__main__":
    key = jax.random.PRNGKey(0)
    k1, k2, k3 = jax.random.split(key, 3)

    N, C = 20, 32  # batch=20 (not a multiple of 8 -> exercises masked last tile)
    logits = jax.random.normal(k1, (N, C), dtype=jnp.float32)
    target = jax.random.randint(k2, (N,), 0, C, dtype=jnp.int32)

    ref = _reference(logits, target, epsilon=0.1)

    # Default path: tile chooser covers the whole batch in one block.
    loss1 = jax.block_until_ready(
        label_smoothing_cross_entropy(logits, target, epsilon=0.1))
    assert jnp.allclose(loss1, ref, rtol=1e-5, atol=1e-5), (loss1, ref)

    # Explicit multi-tile path: 8-row tiles -> 3 grid steps, per-block partials,
    # masked partial last tile.
    loss2 = jax.block_until_ready(
        label_smoothing_cross_entropy(logits, target, epsilon=0.1, tile_n=8))
    assert jnp.allclose(loss2, ref, rtol=1e-5, atol=1e-5), (loss2, ref)

    # reduction='sum' path.
    ref_sum = _reference(logits, target, epsilon=0.1, reduction='sum')
    loss3 = jax.block_until_ready(
        label_smoothing_cross_entropy(logits, target, epsilon=0.1,
                                      reduction='sum', tile_n=8))
    assert jnp.allclose(loss3, ref_sum, rtol=1e-5, atol=1e-5), (loss3, ref_sum)

    # bf16 logits exercise the native-dtype max/one-hot-select path.
    logits_bf = jax.random.normal(k3, (24, 128), dtype=jnp.bfloat16)
    target_bf = jax.random.randint(k2, (24,), 0, 128, dtype=jnp.int32)
    ref_bf = _reference(logits_bf, target_bf, epsilon=0.1)
    loss4 = jax.block_until_ready(
        label_smoothing_cross_entropy(logits_bf, target_bf, epsilon=0.1))
    assert jnp.allclose(loss4, ref_bf, rtol=1e-2, atol=1e-2), (loss4, ref_bf)

    print("KERNEL_OK")
</pallas_src>

<mosaic_0001>
module attributes {stable_mosaic.version = 11 : i64} {
  func.func @_ls_ce_kernel(%arg0: i32, %arg1: memref<20x32xf32, #tpu.memory_space<vmem>>, %arg2: memref<20x1xi32, #tpu.memory_space<vmem>>, %arg3: memref<8x128xf32, #tpu.memory_space<vmem>>) attributes {dimension_semantics = [#tpu.dimension_semantics<parallel>], iteration_bounds = array<i64: 1>, scalar_prefetch = 0 : i64, scratch_operands = 0 : i64, tpu.core_type = #tpu.core_type<tc>, window_params = [{transform_indices = @transform_0, window_bounds = array<i64: 20, 32>}, {transform_indices = @transform_1, window_bounds = array<i64: 20, 1>}, {transform_indices = @transform_2, window_bounds = array<i64: 8, 128>}]} {
    %c0 = arith.constant 0 : index
    %c0_0 = arith.constant 0 : index
    %0 = vector.load %arg1[%c0, %c0_0] : memref<20x32xf32, #tpu.memory_space<vmem>>, vector<20x32xf32>
    %c0_1 = arith.constant 0 : index
    %c0_2 = arith.constant 0 : index
    %1 = vector.load %arg2[%c0_1, %c0_2] : memref<20x1xi32, #tpu.memory_space<vmem>>, vector<20x1xi32>
    %c20_i32 = arith.constant 20 : i32
    %2 = arith.muli %arg0, %c20_i32 : i32
    %3 = tpu.iota {dimensions = array<i32: 0>} : vector<20x1xi32>
    %4 = vector.broadcast %2 : i32 to vector<20x1xi32>
    %5 = arith.addi %4, %3 : vector<20x1xi32>
    %c20_i32_3 = arith.constant 20 : i32
    %6 = vector.broadcast %c20_i32_3 : i32 to vector<20x1xi32>
    %7 = arith.cmpi slt, %5, %6 : vector<20x1xi32>
    %cst = arith.constant dense<0xFF800000> : vector<20xf32>
    %8 = vector.multi_reduction <maximumf>, %0, %cst [1] : vector<20x32xf32> to vector<20xf32>
    %9 = vector.shape_cast %8 : vector<20xf32> to vector<20x1xf32>
    %10 = tpu.iota {dimensions = array<i32: 1>} : vector<1x32xi32>
    %11 = vector.broadcast %10 : vector<1x32xi32> to vector<20x32xi32>
    %12 = vector.broadcast %1 : vector<20x1xi32> to vector<20x32xi32>
    %13 = arith.cmpi eq, %11, %12 : vector<20x32xi32>
    %cst_4 = arith.constant 0.000000e+00 : f32
    %14 = vector.broadcast %cst_4 : f32 to vector<20x32xf32>
    %15 = arith.select %13, %0, %14 : vector<20x32xi1>, vector<20x32xf32>
    %cst_5 = arith.constant dense<0.000000e+00> : vector<20xf32>
    %16 = vector.multi_reduction <add>, %15, %cst_5 [1] : vector<20x32xf32> to vector<20xf32>
    %17 = vector.shape_cast %16 : vector<20xf32> to vector<20x1xf32>
    %18 = vector.broadcast %9 : vector<20x1xf32> to vector<20x32xf32>
    %19 = arith.subf %0, %18 : vector<20x32xf32>
    %20 = math.exp %19 : vector<20x32xf32>
    %cst_6 = arith.constant dense<0.000000e+00> : vector<20xf32>
    %21 = vector.multi_reduction <add>, %20, %cst_6 [1] : vector<20x32xf32> to vector<20xf32>
    %22 = vector.shape_cast %21 : vector<20xf32> to vector<20x1xf32>
    %23 = math.log %22 : vector<20x1xf32>
    %24 = arith.addf %23, %9 : vector<20x1xf32>
    %cst_7 = arith.constant dense<0.000000e+00> : vector<20xf32>
    %25 = vector.multi_reduction <add>, %0, %cst_7 [1] : vector<20x32xf32> to vector<20xf32>
    %26 = vector.shape_cast %25 : vector<20xf32> to vector<20x1xf32>
    %cst_8 = arith.constant 3.125000e-03 : f32
    %27 = vector.broadcast %cst_8 : f32 to vector<20x1xf32>
    %28 = arith.mulf %27, %26 : vector<20x1xf32>
    %29 = arith.subf %24, %28 : vector<20x1xf32>
    %cst_9 = arith.constant 0.899999976 : f32
    %30 = vector.broadcast %cst_9 : f32 to vector<20x1xf32>
    %31 = arith.mulf %30, %17 : vector<20x1xf32>
    %32 = arith.subf %29, %31 : vector<20x1xf32>
    %cst_10 = arith.constant 0.000000e+00 : f32
    %33 = vector.broadcast %cst_10 : f32 to vector<20x1xf32>
    %34 = arith.select %7, %32, %33 : vector<20x1xi1>, vector<20x1xf32>
    %cst_11 = arith.constant dense<0.000000e+00> : vector<1xf32>
    %35 = vector.multi_reduction <add>, %34, %cst_11 [0] : vector<20x1xf32> to vector<1xf32>
    %36 = vector.shape_cast %35 : vector<1xf32> to vector<1x1xf32>
    %37 = vector.shape_cast %36 : vector<1x1xf32> to vector<1x1xf32>
    %38 = vector.broadcast %37 : vector<1x1xf32> to vector<8x128xf32>
    %c0_12 = arith.constant 0 : index
    %c0_13 = arith.constant 0 : index
    %39 = vector.load %arg3[%c0_12, %c0_13] : memref<8x128xf32, #tpu.memory_space<vmem>>, vector<8x128xf32>
    tpu.vector_store %arg3[%c0_12, %c0_13], %38 {strides = array<i32>} : memref<8x128xf32, #tpu.memory_space<vmem>>, vector<8x128xf32>,
    return
  }
  func.func @transform_0(%arg0: i32) -> (i32, i32) {
    %c0_i32 = arith.constant 0 : i32
    %c0_i32_0 = arith.constant 0 : i32
    return %arg0, %c0_i32 : i32, i32
  }
  func.func @transform_1(%arg0: i32) -> (i32, i32) {
    %c0_i32 = arith.constant 0 : i32
    %c0_i32_0 = arith.constant 0 : i32
    return %arg0, %c0_i32 : i32, i32
  }
  func.func @transform_2(%arg0: i32) -> (i32, i32) {
    %c0_i32 = arith.constant 0 : i32
    %c0_i32_0 = arith.constant 0 : i32
    return %arg0, %c0_i32 : i32, i32
  }
}

</mosaic_0001>

<llo_original>
// kernel: tpu_custom_call.1
$region0: #{tpu_custom_call.1}
  #allocation0 [shape = 'u32[]', space=smem, size = 0x4, offset = 0x4, fixed_abs, tag = 'smem constant byte address 0x4 - core index']
  #allocation1 [shape = 'u32[72,128]{1,0:T(1,128)}', space=vmem, size = 0x9000, scoped, tag = 'internal scratch']
  %s0 = inlined_call_operand.vmem [shape: f32[20,32], index: 0, kind: input, shape index: {}]
  %s1 = inlined_call_operand.vmem [shape: s32[20,1], index: 1, kind: input, shape index: {}]
  %s2 = inlined_call_operand.hbm [shape: f32[8,128], index: 2, kind: output, shape index: {}]
  %s3 = sld [smem:[#allocation0]]
  $region18: #{tpu_custom_call.1} parent=0
    _
  %s5 = ssub.s32 1, %s3
  %s6 = scalar_select 0, %s5, %s3
  $region1: #{tpu_custom_call.1} parent=0
    #allocation2 [shape = 'u8[4096]{0}', space=vmem, size = 0x1000, scoped, tag = 'output window, operand 0, single buffered']
    #allocation3 [shape = 's32[1]{0}', space=sflag, size = 0x4, scoped, tag = 'scoped memory for tpu_custom_call.1']
    %7 = vsyncpa [#allocation3], 0
    // Predicated region
    $region2: #{tpu_custom_call.1} parent=1 // pred_check
      _
    $region3: #{tpu_custom_call.1} parent=1 // pred_check_branch
      %9 = sbr.rel (0) target = $region5
    $region4: #{tpu_custom_call.1} parent=1 // pred_region
      _
    $region5: #{tpu_custom_call.1} parent=1 // pred_fallthru
      _
    // Predicated region
    $region6: #{tpu_custom_call.1} parent=1 // pred_check
      _
    $region7: #{tpu_custom_call.1} parent=1 // pred_check_branch
      %11 = sbr.rel (0) target = $region9
    $region8: #{tpu_custom_call.1} parent=1 // pred_region
      _
    $region9: #{tpu_custom_call.1} parent=1 // pred_fallthru
      _
    %v12 = vld [vmem:[%s0] sm:$0xff]
    %v13 = vld [vmem:[%s0 + $0x8] sm:$0xff]
    %v14 = vld [vmem:[%s0 + $0x10] sm:$0xf]
    %v15 = vld [vmem:[%s1] sm:$0xff]
    %v16 = vld [vmem:[%s1 + $0x8] sm:$0xff]
    %v17 = vld [vmem:[%s1 + $0x10] sm:$0xf]
    %s18 = smul.u32 0, 20
    %v19 = vlaneseq
    %v20 = vshrl.u32 %v19, 7
    %v21 = vadd.s32 %v20, 8
    %v22 = vadd.s32 %v20, 16
    %v23 = vstv %s18
    %v24 = vadd.s32 %v23, %v20
    %v25 = vadd.s32 %v23, %v21
    %v26 = vadd.s32 %v23, %v22
    %vm27 = vcmp.lt.s32.totalorder %v24, 20
    %vm28 = vcmp.lt.s32.totalorder %v25, 20
    %vm29 = vcmp.lt.s32.totalorder %v26, 20
    %vm30 = vcmask 261120
    %v31 = vsel %vm30, %v12, -inf
    %32 = vmax.xlane.f32.xlu0 %v31
    %v33 = vpop.xlane.xlu0 %32
    %v34 = vsel %vm30, %v13, -inf
    %35 = vmax.xlane.f32.xlu0 %v34
    %v36 = vpop.xlane.xlu0 %35
    %vm37 = vcmask 257024
    %v38 = vsel %vm37, %v14, -inf
    %39 = vmax.xlane.f32.xlu0 %v38
    %v40 = vpop.xlane.xlu0 %39
    %v41 = vlaneseq
    %v42 = vand.u32 %v41, 127
    %43 = vset.pattern.permute.xlu0 0
    %44 = vperm.xlu0 %43, %v15
    %v45 = vpop.permute.xlu0 %44
    %46 = vset.pattern.permute.xlu0 0
    %47 = vperm.xlu0 %46, %v16
    %v48 = vpop.permute.xlu0 %47
    %49 = vset.pattern.permute.xlu0 0
    %50 = vperm.xlu0 %49, %v17
    %v51 = vpop.permute.xlu0 %50
    %vm52 = vcmp.eq.s32.totalorder %v42, %v45
    %vm53 = vcmp.eq.s32.totalorder %v42, %v48
    %vm54 = vcmp.eq.s32.totalorder %v42, %v51
    %v55 = vsel %vm52, %v12, 0.0
    %v56 = vsel %vm53, %v13, 0.0
    %v57 = vsel %vm54, %v14, 0.0
    %v58 = vsel %vm30, %v55, 0.0
    %59 = vadd.xlane.f32.xlu0 %v58
    %v60 = vpop.xlane.xlu0 %59
    %v61 = vsel %vm30, %v56, 0.0
    %62 = vadd.xlane.f32.xlu0 %v61
    %v63 = vpop.xlane.xlu0 %62
    %v64 = vsel %vm37, %v57, 0.0
    %65 = vadd.xlane.f32.xlu0 %v64
    %v66 = vpop.xlane.xlu0 %65
    %v67 = vsub.f32 %v12, %v33
    %v68 = vsub.f32 %v13, %v36
    %v69 = vsub.f32 %v14, %v40
    %v70 = vmul.f32 %v67, 1.442695
    %v71 = vpow.pop %v70
    %v72 = vmul.f32 %v68, 1.442695
    %v73 = vpow.pop %v72
    %v74 = vmul.f32 %v69, 1.442695
    %v75 = vpow.pop %v74
    %v76 = vsel %vm30, %v71, 0.0
    %77 = vadd.xlane.f32.xlu0 %v76
    %v78 = vpop.xlane.xlu0 %77
    %v79 = vsel %vm30, %v73, 0.0
    %80 = vadd.xlane.f32.xlu0 %v79
    %v81 = vpop.xlane.xlu0 %80
    %v82 = vsel %vm37, %v75, 0.0
    %83 = vadd.xlane.f32.xlu0 %v82
    %v84 = vpop.xlane.xlu0 %83
    %v85 = vlog2.pop %v78
    %v86 = vmul.f32 %v85, 0.6931472
    %v87 = vlog2.pop %v81
    %v88 = vmul.f32 %v87, 0.6931472
    %v89 = vlog2.pop %v84
    %v90 = vmul.f32 %v89, 0.6931472
    %v91 = vadd.f32 %v86, %v33
    %v92 = vadd.f32 %v88, %v36
    %v93 = vadd.f32 %v90, %v40
    %v94 = vsel %vm30, %v12, 0.0
    %95 = vadd.xlane.f32.xlu0 %v94
    %v96 = vpop.xlane.xlu0 %95
    %v97 = vsel %vm30, %v13, 0.0
    %98 = vadd.xlane.f32.xlu0 %v97
    %v99 = vpop.xlane.xlu0 %98
    %v100 = vsel %vm37, %v14, 0.0
    %101 = vadd.xlane.f32.xlu0 %v100
    %v102 = vpop.xlane.xlu0 %101
    %v103 = vmul.f32 %v96, 0.003125
    %v104 = vmul.f32 %v99, 0.003125
    %v105 = vmul.f32 %v102, 0.003125
    %v106 = vsub.f32 %v91, %v103
    %v107 = vsub.f32 %v92, %v104
    %v108 = vsub.f32 %v93, %v105
    %v109 = vmul.f32 %v60, 0.9
    %v110 = vmul.f32 %v63, 0.9
    %v111 = vmul.f32 %v66, 0.9
    %v112 = vsub.f32 %v106, %v109
    %v113 = vsub.f32 %v107, %v110
    %v114 = vsub.f32 %v108, %v111
    %v115 = vsel %vm27, %v112, 0.0
    %v116 = vsel %vm28, %v113, 0.0
    %v117 = vsel %vm29, %v114, 0.0
    %v118 = vadd.f32 %v115, %v116
    %vm119 = vcmask 1043456
    %v120 = vsel %vm119, %v117, 0.0
    %v121 = vadd.f32 %v118, %v120
    %v122 = vrot.slane %v121, 4
    %v123 = vadd.f32 %v121, %v122
    %v124 = vrot.slane %v123, 2
    %v125 = vadd.f32 %v123, %v124
    %v126 = vrot.slane %v125, 1
    %v127 = vadd.f32 %v125, %v126
    %128 = vst [vmem:[#allocation2] sm:$0xff] %v127
    // Predicated region
    $region10: #{tpu_custom_call.1} parent=1 // pred_check
      _
    $region11: #{tpu_custom_call.1} parent=1 // pred_check_branch
      %130 = sbr.rel (0) target = $region13
    $region12: #{tpu_custom_call.1} parent=1 // pred_region
      %132 = vsyncadd [#allocation3], 0
      %s134 = sshll.u32 [#allocation2], 4
      %s135 = int_to_ptr.vmem [resolvable:$true] %s134
      %s136 = sshll.u32 %s2, 4
      %s137 = int_to_ptr.hbm [resolvable:$true] %s136
      %139 = dma.vmem_to_hbm [thread:$0]  %s135, 128, %s137, [#allocation3]
    $region13: #{tpu_custom_call.1} parent=1 // pred_fallthru
      _
    // Predicated region
    $region14: #{tpu_custom_call.1} parent=1 // pred_check
      _
    $region15: #{tpu_custom_call.1} parent=1 // pred_check_branch
      %141 = sbr.rel (0) target = $region17
    $region16: #{tpu_custom_call.1} parent=1 // pred_region
      %143 = dma.done [#allocation3], 128
    $region17: #{tpu_custom_call.1} parent=1 // pred_fallthru
      _
    %144 = vsyncpa [#allocation3], 1

</llo_original>
